<compile_context>
chip_gen: v6e
topology: v6e:2x2x1
jax: 0.10.0
libtpu: 0.0.40
codegen_flags: <defaults>
</compile_context>

<pallas_src>
import functools
import math

import jax
import jax.numpy as jnp
from jax.experimental import pallas as pl
from jax.experimental.pallas import tpu as pltpu

IN_DIM = 12 * 64   # 768
H1 = 256
H2 = 128
OUT = 1


def _round_up(n, m):
    return ((n + m - 1) // m) * m


def chessnet_kernel(x_ref, w1_ref, b1_ref, w2_ref, b2_ref, w3_ref, b3_ref, o_ref):
    # x tile and w1/w2 are bf16 (MXU fast path); biases / epilogue stay f32.
    x = x_ref[...]                                              # (TB, 768) bf16

    # fc1 + relu: bf16 MXU matmul, f32 accumulation, f32 epilogue.
    h1 = jnp.dot(x, w1_ref[...], preferred_element_type=jnp.float32)
    h1 = jnp.maximum(h1 + b1_ref[...], 0.0)                     # (TB, 256) f32

    # fc2 + relu.
    h2 = jnp.dot(h1.astype(jnp.bfloat16), w2_ref[...],
                 preferred_element_type=jnp.float32)
    h2 = jnp.maximum(h2 + b2_ref[...], 0.0)                     # (TB, 128) f32

    # fc3 (out_features == 1): elementwise mul + lane reduction on the XLU
    # instead of an N=1 MXU matmul.
    out = jnp.sum(h2 * w3_ref[...], axis=-1, keepdims=True)     # (TB, 1) f32
    out = out + b3_ref[...]

    o_ref[...] = jnp.tanh(out)                                  # EUP


def chessnet_forward(x, params, *, block_b=512):
    """Fused forward pass: tanh(fc3(relu(fc2(relu(fc1(x))))))."""
    w1, b1, w2, b2, w3, b3 = params
    B = x.shape[0]

    # Balanced batch tiling: choose the number of tiles from block_b, then
    # size each tile as ceil(B / num_tiles) rounded up to 16 (bf16 sublane
    # packing).  This keeps the last tile nearly full instead of mostly pad.
    num_tiles = max(1, math.ceil(B / block_b))
    TB = _round_up(math.ceil(B / num_tiles), 16)
    Bp = TB * num_tiles
    if Bp != B:
        x = jnp.pad(x, ((0, Bp - B), (0, 0)))

    # bf16 matmul operands (halves HBM traffic for x); accumulation and
    # epilogue stay f32 in the kernel.
    x_bf = x.astype(jnp.bfloat16)
    w1_bf = w1.astype(jnp.bfloat16)
    w2_bf = w2.astype(jnp.bfloat16)

    cost = pl.CostEstimate(
        flops=2 * Bp * (IN_DIM * H1 + H1 * H2 + H2),
        transcendentals=Bp,                                   # tanh per row
        bytes_accessed=(x_bf.size * 2 + w1_bf.size * 2 + w2_bf.size * 2
                        + (b1.size + b2.size + w3.size + b3.size) * 4
                        + Bp * OUT * 4),
    )

    def resident(shape):
        # Constant block index -> buffer stays resident across grid steps.
        return pl.BlockSpec(shape, lambda i: (0, 0))

    out = pl.pallas_call(
        chessnet_kernel,
        out_shape=jax.ShapeDtypeStruct((Bp, OUT), jnp.float32),
        grid=(num_tiles,),
        in_specs=[
            pl.BlockSpec((TB, IN_DIM), lambda i: (i, 0)),     # x tile (streamed)
            resident((IN_DIM, H1)),                           # w1 (bf16)
            resident((1, H1)),                                # b1 (f32)
            resident((H1, H2)),                               # w2 (bf16)
            resident((1, H2)),                                # b2 (f32)
            resident((1, H2)),                                # w3 row (f32)
            resident((1, OUT)),                               # b3 (f32)
        ],
        out_specs=pl.BlockSpec((TB, OUT), lambda i: (i, 0)),
        compiler_params=pltpu.CompilerParams(
            dimension_semantics=("parallel",)),               # v7x megacore
        cost_estimate=cost,
    )(x_bf, w1_bf, b1, w2_bf, b2, w3, b3)

    return out[:B]


def init_params(key):
    """Deterministic init mirroring nn.Linear shapes (stored transposed)."""
    k1, k2, k3, k4, k5, k6 = jax.random.split(key, 6)

    def lin(kw, kb, fan_in, fan_out):
        bound = 1.0 / jnp.sqrt(fan_in)
        w = jax.random.uniform(kw, (fan_in, fan_out), jnp.float32, -bound, bound)
        b = jax.random.uniform(kb, (1, fan_out), jnp.float32, -bound, bound)
        return w, b

    w1, b1 = lin(k1, k2, IN_DIM, H1)
    w2, b2 = lin(k3, k4, H1, H2)
    w3_full, b3 = lin(k5, k6, H2, OUT)
    # keep w3 as (1, 128) so it broadcasts against h2 in the kernel
    w3 = w3_full.T
    return (w1, b1, w2, b2, w3, b3)


def reference_forward_f32(x, params):
    w1, b1, w2, b2, w3, b3 = params
    h1 = jax.nn.relu(x @ w1 + b1)
    h2 = jax.nn.relu(h1 @ w2 + b2)
    return jnp.tanh(h2 @ w3.T + b3)


def reference_forward_bf16(x, params):
    """Reference matching the kernel's precision (bf16 operands, f32 accum)."""
    w1, b1, w2, b2, w3, b3 = params
    dot = functools.partial(jnp.dot, preferred_element_type=jnp.float32)
    h1 = jax.nn.relu(dot(x.astype(jnp.bfloat16), w1.astype(jnp.bfloat16)) + b1)
    h2 = jax.nn.relu(dot(h1.astype(jnp.bfloat16), w2.astype(jnp.bfloat16)) + b2)
    return jnp.tanh(jnp.sum(h2 * w3, axis=-1, keepdims=True) + b3)


if __name__ == "__main__":
    key = jax.random.PRNGKey(0)
    kp, kx1, kx2, kx3 = jax.random.split(key, 4)
    params = init_params(kp)

    # Small batch (single tile, padded to the bf16 sublane multiple).
    B = 8
    x = jax.random.normal(kx1, (B, IN_DIM), jnp.float32)
    out = jax.block_until_ready(chessnet_forward(x, params))
    assert out.shape == (B, OUT)
    ref_bf16 = reference_forward_bf16(x, params)
    ref_f32 = reference_forward_f32(x, params)
    assert jnp.allclose(out, ref_bf16, atol=1e-3, rtol=1e-3), (out, ref_bf16)
    assert jnp.allclose(out, ref_f32, atol=5e-2, rtol=5e-2), (out, ref_f32)

    # Non-16-multiple batch: single balanced tile (304 rows, only 4 pad rows).
    B2 = 300
    x2 = jax.random.normal(kx2, (B2, IN_DIM), jnp.float32)
    out2 = jax.block_until_ready(chessnet_forward(x2, params))
    assert out2.shape == (B2, OUT)
    ref2 = reference_forward_bf16(x2, params)
    assert jnp.allclose(out2, ref2, atol=1e-3, rtol=1e-3), (out2, ref2)

    # Larger batch: exercises the multi-tile grid with balanced tiles.
    B3 = 1000
    x3 = jax.random.normal(kx3, (B3, IN_DIM), jnp.float32)
    out3 = jax.block_until_ready(chessnet_forward(x3, params))
    assert out3.shape == (B3, OUT)
    ref3 = reference_forward_bf16(x3, params)
    assert jnp.allclose(out3, ref3, atol=1e-3, rtol=1e-3), (out3, ref3)

    print("KERNEL_OK")
</pallas_src>

<mosaic_0001>
module attributes {stable_mosaic.version = 11 : i64} {
  func.func @chessnet_kernel(%arg0: i32, %arg1: memref<16x768xbf16, #tpu.memory_space<vmem>>, %arg2: memref<768x256xbf16, #tpu.memory_space<vmem>>, %arg3: memref<1x256xf32, #tpu.memory_space<vmem>>, %arg4: memref<256x128xbf16, #tpu.memory_space<vmem>>, %arg5: memref<1x128xf32, #tpu.memory_space<vmem>>, %arg6: memref<1x128xf32, #tpu.memory_space<vmem>>, %arg7: memref<1x1xf32, #tpu.memory_space<vmem>>, %arg8: memref<16x1xf32, #tpu.memory_space<vmem>>) attributes {dimension_semantics = [#tpu.dimension_semantics<parallel>], iteration_bounds = array<i64: 1>, scalar_prefetch = 0 : i64, scratch_operands = 0 : i64, tpu.core_type = #tpu.core_type<tc>, window_params = [{transform_indices = @transform_0, window_bounds = array<i64: 16, 768>}, {pipeline_mode = #tpu.pipeline_mode<synchronous>, transform_indices = @transform_1, window_bounds = array<i64: 768, 256>}, {pipeline_mode = #tpu.pipeline_mode<synchronous>, transform_indices = @transform_2, window_bounds = array<i64: 1, 256>}, {pipeline_mode = #tpu.pipeline_mode<synchronous>, transform_indices = @transform_3, window_bounds = array<i64: 256, 128>}, {pipeline_mode = #tpu.pipeline_mode<synchronous>, transform_indices = @transform_4, window_bounds = array<i64: 1, 128>}, {pipeline_mode = #tpu.pipeline_mode<synchronous>, transform_indices = @transform_5, window_bounds = array<i64: 1, 128>}, {pipeline_mode = #tpu.pipeline_mode<synchronous>, transform_indices = @transform_6, window_bounds = array<i64: 1, 1>}, {transform_indices = @transform_7, window_bounds = array<i64: 16, 1>}]} {
    %c0 = arith.constant 0 : index
    %c0_0 = arith.constant 0 : index
    %0 = vector.load %arg1[%c0, %c0_0] : memref<16x768xbf16, #tpu.memory_space<vmem>>, vector<16x768xbf16>
    %c0_1 = arith.constant 0 : index
    %c0_2 = arith.constant 0 : index
    %1 = vector.load %arg2[%c0_1, %c0_2] : memref<768x256xbf16, #tpu.memory_space<vmem>>, vector<768x256xbf16>
    %cst = arith.constant dense<0.000000e+00> : vector<16x256xf32>
    %2 = tpu.matmul %0, %1, %cst {dimension_numbers = #tpu.dot_dimension_numbers<[1], [0], [0], [1], [0, 0, 1, 1], [], []>} : vector<16x768xbf16>, vector<768x256xbf16>, vector<16x256xf32> -> vector<16x256xf32>
    %c0_3 = arith.constant 0 : index
    %c0_4 = arith.constant 0 : index
    %3 = vector.load %arg3[%c0_3, %c0_4] : memref<1x256xf32, #tpu.memory_space<vmem>>, vector<1x256xf32>
    %4 = vector.broadcast %3 : vector<1x256xf32> to vector<16x256xf32>
    %5 = arith.addf %2, %4 : vector<16x256xf32>
    %cst_5 = arith.constant 0.000000e+00 : f32
    %6 = vector.broadcast %cst_5 : f32 to vector<16x256xf32>
    %7 = arith.maximumf %5, %6 : vector<16x256xf32>
    %8 = arith.truncf %7 : vector<16x256xf32> to vector<16x256xbf16>
    %c0_6 = arith.constant 0 : index
    %c0_7 = arith.constant 0 : index
    %9 = vector.load %arg4[%c0_6, %c0_7] : memref<256x128xbf16, #tpu.memory_space<vmem>>, vector<256x128xbf16>
    %cst_8 = arith.constant dense<0.000000e+00> : vector<16x128xf32>
    %10 = tpu.matmul %8, %9, %cst_8 {dimension_numbers = #tpu.dot_dimension_numbers<[1], [0], [0], [1], [0, 0, 1, 1], [], []>} : vector<16x256xbf16>, vector<256x128xbf16>, vector<16x128xf32> -> vector<16x128xf32>
    %c0_9 = arith.constant 0 : index
    %c0_10 = arith.constant 0 : index
    %11 = vector.load %arg5[%c0_9, %c0_10] : memref<1x128xf32, #tpu.memory_space<vmem>>, vector<1x128xf32>
    %12 = vector.broadcast %11 : vector<1x128xf32> to vector<16x128xf32>
    %13 = arith.addf %10, %12 : vector<16x128xf32>
    %cst_11 = arith.constant 0.000000e+00 : f32
    %14 = vector.broadcast %cst_11 : f32 to vector<16x128xf32>
    %15 = arith.maximumf %13, %14 : vector<16x128xf32>
    %c0_12 = arith.constant 0 : index
    %c0_13 = arith.constant 0 : index
    %16 = vector.load %arg6[%c0_12, %c0_13] : memref<1x128xf32, #tpu.memory_space<vmem>>, vector<1x128xf32>
    %17 = vector.broadcast %16 : vector<1x128xf32> to vector<16x128xf32>
    %18 = arith.mulf %15, %17 : vector<16x128xf32>
    %cst_14 = arith.constant dense<0.000000e+00> : vector<16xf32>
    %19 = vector.multi_reduction <add>, %18, %cst_14 [1] : vector<16x128xf32> to vector<16xf32>
    %20 = vector.shape_cast %19 : vector<16xf32> to vector<16x1xf32>
    %c0_15 = arith.constant 0 : index
    %c0_16 = arith.constant 0 : index
    %21 = vector.load %arg7[%c0_15, %c0_16] : memref<1x1xf32, #tpu.memory_space<vmem>>, vector<1x1xf32>
    %22 = vector.broadcast %21 : vector<1x1xf32> to vector<16x1xf32>
    %23 = arith.addf %20, %22 : vector<16x1xf32>
    %24 = math.tanh %23 : vector<16x1xf32>
    %c0_17 = arith.constant 0 : index
    %c0_18 = arith.constant 0 : index
    %25 = vector.load %arg8[%c0_17, %c0_18] : memref<16x1xf32, #tpu.memory_space<vmem>>, vector<16x1xf32>
    tpu.vector_store %arg8[%c0_17, %c0_18], %24 {strides = array<i32>} : memref<16x1xf32, #tpu.memory_space<vmem>>, vector<16x1xf32>,
    return
  }
  func.func @transform_0(%arg0: i32) -> (i32, i32) {
    %c0_i32 = arith.constant 0 : i32
    %c0_i32_0 = arith.constant 0 : i32
    return %arg0, %c0_i32 : i32, i32
  }
  func.func @transform_1(%arg0: i32) -> (i32, i32) {
    %c0_i32 = arith.constant 0 : i32
    %c0_i32_0 = arith.constant 0 : i32
    %c0_i32_1 = arith.constant 0 : i32
    return %c0_i32, %c0_i32_0 : i32, i32
  }
  func.func @transform_2(%arg0: i32) -> (i32, i32) {
    %c0_i32 = arith.constant 0 : i32
    %c0_i32_0 = arith.constant 0 : i32
    %c0_i32_1 = arith.constant 0 : i32
    return %c0_i32, %c0_i32_0 : i32, i32
  }
  func.func @transform_3(%arg0: i32) -> (i32, i32) {
    %c0_i32 = arith.constant 0 : i32
    %c0_i32_0 = arith.constant 0 : i32
    %c0_i32_1 = arith.constant 0 : i32
    return %c0_i32, %c0_i32_0 : i32, i32
  }
  func.func @transform_4(%arg0: i32) -> (i32, i32) {
    %c0_i32 = arith.constant 0 : i32
    %c0_i32_0 = arith.constant 0 : i32
    %c0_i32_1 = arith.constant 0 : i32
    return %c0_i32, %c0_i32_0 : i32, i32
  }
  func.func @transform_5(%arg0: i32) -> (i32, i32) {
    %c0_i32 = arith.constant 0 : i32
    %c0_i32_0 = arith.constant 0 : i32
    %c0_i32_1 = arith.constant 0 : i32
    return %c0_i32, %c0_i32_0 : i32, i32
  }
  func.func @transform_6(%arg0: i32) -> (i32, i32) {
    %c0_i32 = arith.constant 0 : i32
    %c0_i32_0 = arith.constant 0 : i32
    %c0_i32_1 = arith.constant 0 : i32
    return %c0_i32, %c0_i32_0 : i32, i32
  }
  func.func @transform_7(%arg0: i32) -> (i32, i32) {
    %c0_i32 = arith.constant 0 : i32
    %c0_i32_0 = arith.constant 0 : i32
    return %arg0, %c0_i32 : i32, i32
  }
}

</mosaic_0001>

<llo_original>
// kernel: tpu_custom_call.1
$region0: #{tpu_custom_call.1}
  #allocation0 [shape = 'u32[]', space=smem, size = 0x4, offset = 0x4, fixed_abs, tag = 'smem constant byte address 0x4 - core index']
  #allocation1 [shape = 'u32[144,128]{1,0:T(1,128)}', space=vmem, size = 0x12000, scoped, tag = 'internal scratch']
  #allocation2 [shape = 'f32[1,1]{1,0:T(1,128)S(1)}', space=vmem, size = 0x200, scoped, tag = 'scoped memory for tpu_custom_call.1']
  %s0 = inlined_call_operand.hbm [shape: bf16[16,768], index: 0, kind: input, shape index: {}]
  %s1 = inlined_call_operand.hbm [shape: bf16[768,256], index: 1, kind: input, shape index: {}]
  %s2 = inlined_call_operand.vmem [shape: f32[1,256], index: 2, kind: input, shape index: {}]
  %s3 = inlined_call_operand.hbm [shape: bf16[256,128], index: 3, kind: input, shape index: {}]
  %s4 = inlined_call_operand.vmem [shape: f32[1,128], index: 4, kind: input, shape index: {}]
  %s5 = inlined_call_operand.vmem [shape: f32[1,128], index: 5, kind: input, shape index: {}]
  %s6 = inlined_call_operand.<no memory space> [shape: f32[1,1], index: 6, kind: input, shape index: {}]
  %s7 = inlined_call_operand.vmem [shape: f32[16,1], index: 7, kind: output, shape index: {}]
  %s8 = sld [smem:[#allocation0]]
  $region50: #{tpu_custom_call.1} parent=0
    _
  %s10 = ssub.s32 1, %s8
  %s11 = scalar_select 0, %s10, %s8
  %v12 = vstv %s6
  %13 = vst [vmem:[#allocation2] sm:$0x1] %v12
  $region1: #{tpu_custom_call.1} parent=0
    #allocation3 [shape = 'u8[24576]{0}', space=vmem, size = 0x6000, scoped, tag = 'input window, operand 0, single buffered']
    #allocation4 [shape = 's32[1]{0}', space=sflag, size = 0x4, scoped, tag = 'scoped memory for tpu_custom_call.1']
    #allocation5 [shape = 'u8[393216]{0}', space=vmem, size = 0x60000, scoped, tag = 'input window, operand 1, single buffered']
    #allocation6 [shape = 's32[1]{0}', space=sflag, size = 0x4, scoped, tag = 'scoped memory for tpu_custom_call.1']
    #allocation7 [shape = 'u8[65536]{0}', space=vmem, size = 0x10000, scoped, tag = 'input window, operand 3, single buffered']
    %14 = vsyncpa [#allocation4], 0
    %15 = vsyncpa [#allocation6], 0
    // Predicated region
    $region2: #{tpu_custom_call.1} parent=1 // pred_check
      _
    $region3: #{tpu_custom_call.1} parent=1 // pred_check_branch
      %17 = sbr.rel (0) target = $region5
    $region4: #{tpu_custom_call.1} parent=1 // pred_region
      %s19 = ssub.s32 768, 768
      %20 = vsyncadd [#allocation4], %s19
      %s21 = sshll.u32 [#allocation3], 4
      %s22 = int_to_ptr.vmem [resolvable:$true] %s21
      %27 = dma.hbm_to_vmem [thread:$0]  %s0, 768, %s22, [#allocation4], 384, 384, 24
    $region5: #{tpu_custom_call.1} parent=1 // pred_fallthru
      _
    // Predicated region
    $region6: #{tpu_custom_call.1} parent=1 // pred_check
      _
    $region7: #{tpu_custom_call.1} parent=1 // pred_check_branch
      %29 = sbr.rel (0) target = $region9
    $region8: #{tpu_custom_call.1} parent=1 // pred_region
      %s31 = ssub.s32 12288, 12288
      %32 = vsyncadd [#allocation6], %s31
      %s33 = sshll.u32 [#allocation5], 4
      %s34 = int_to_ptr.vmem [resolvable:$true] %s33
      %39 = dma.hbm_to_vmem [thread:$0]  %s1, 12288, %s34, [#allocation6], 128, 128, 8
    $region9: #{tpu_custom_call.1} parent=1 // pred_fallthru
      _
    // Predicated region
    $region10: #{tpu_custom_call.1} parent=1 // pred_check
      _
    $region11: #{tpu_custom_call.1} parent=1 // pred_check_branch
      %41 = sbr.rel (0) target = $region13
    $region12: #{tpu_custom_call.1} parent=1 // pred_region
      _
    $region13: #{tpu_custom_call.1} parent=1 // pred_fallthru
      _
    // Predicated region
    $region14: #{tpu_custom_call.1} parent=1 // pred_check
      _
    $region15: #{tpu_custom_call.1} parent=1 // pred_check_branch
      %43 = sbr.rel (0) target = $region17
    $region16: #{tpu_custom_call.1} parent=1 // pred_region
      %s45 = ssub.s32 2048, 2048
      %46 = vsyncadd [#allocation6], %s45
      %s47 = sshll.u32 [#allocation7], 4
      %s48 = int_to_ptr.vmem [resolvable:$true] %s47
      %53 = dma.hbm_to_vmem [thread:$0]  %s3, 2048, %s48, [#allocation6], 64, 64, 4
    $region17: #{tpu_custom_call.1} parent=1 // pred_fallthru
      _
    // Predicated region
    $region18: #{tpu_custom_call.1} parent=1 // pred_check
      _
    $region19: #{tpu_custom_call.1} parent=1 // pred_check_branch
      %55 = sbr.rel (0) target = $region21
    $region20: #{tpu_custom_call.1} parent=1 // pred_region
      _
    $region21: #{tpu_custom_call.1} parent=1 // pred_fallthru
      _
    // Predicated region
    $region22: #{tpu_custom_call.1} parent=1 // pred_check
      _
    $region23: #{tpu_custom_call.1} parent=1 // pred_check_branch
      %57 = sbr.rel (0) target = $region25
    $region24: #{tpu_custom_call.1} parent=1 // pred_region
      _
    $region25: #{tpu_custom_call.1} parent=1 // pred_fallthru
      _
    // Predicated region
    $region26: #{tpu_custom_call.1} parent=1 // pred_check
      _
    $region27: #{tpu_custom_call.1} parent=1 // pred_check_branch
      %59 = sbr.rel (0) target = $region29
    $region28: #{tpu_custom_call.1} parent=1 // pred_region
      _
    $region29: #{tpu_custom_call.1} parent=1 // pred_fallthru
      _
    // Predicated region
    $region30: #{tpu_custom_call.1} parent=1 // pred_check
      _
    $region31: #{tpu_custom_call.1} parent=1 // pred_check_branch
      %61 = sbr.rel (0) target = $region33
    $region32: #{tpu_custom_call.1} parent=1 // pred_region
      %62 = dma.done [#allocation4], 768
    $region33: #{tpu_custom_call.1} parent=1 // pred_fallthru
      _
    // Predicated region
    $region34: #{tpu_custom_call.1} parent=1 // pred_check
      _
    $region35: #{tpu_custom_call.1} parent=1 // pred_check_branch
      %64 = sbr.rel (0) target = $region37
    $region36: #{tpu_custom_call.1} parent=1 // pred_region
      %65 = dma.done [#allocation6], 12288
    $region37: #{tpu_custom_call.1} parent=1 // pred_fallthru
      _
    // Predicated region
    $region38: #{tpu_custom_call.1} parent=1 // pred_check
      _
    $region39: #{tpu_custom_call.1} parent=1 // pred_check_branch
      %67 = sbr.rel (0) target = $region41
    $region40: #{tpu_custom_call.1} parent=1 // pred_region
      %68 = dma.done [#allocation6], 2048
    $region41: #{tpu_custom_call.1} parent=1 // pred_fallthru
      _
    %v70 = vld [vmem:[#allocation3] sm:$0xff]
    %v71 = vld [vmem:[#allocation3 + $0x8] sm:$0xff]
    %v72 = vld [vmem:[#allocation3 + $0x10] sm:$0xff]
    %v73 = vld [vmem:[#allocation3 + $0x18] sm:$0xff]
    %v74 = vld [vmem:[#allocation3 + $0x20] sm:$0xff]
    %v75 = vld [vmem:[#allocation3 + $0x28] sm:$0xff]
    %v76 = vld [vmem:[#allocation5] sm:$0xff]
    %v77 = vld [vmem:[#allocation5 + $0x8] sm:$0xff]
    %v78 = vld [vmem:[#allocation5 + $0x10] sm:$0xff]
    %v79 = vld [vmem:[#allocation5 + $0x18] sm:$0xff]
    %v80 = vld [vmem:[#allocation5 + $0x20] sm:$0xff]
    %v81 = vld [vmem:[#allocation5 + $0x28] sm:$0xff]
    %v82 = vld [vmem:[#allocation5 + $0x30] sm:$0xff]
    %v83 = vld [vmem:[#allocation5 + $0x38] sm:$0xff]
    %v84 = vld [vmem:[#allocation5 + $0x40] sm:$0xff]
    %v85 = vld [vmem:[#allocation5 + $0x48] sm:$0xff]
    %v86 = vld [vmem:[#allocation5 + $0x50] sm:$0xff]
    %v87 = vld [vmem:[#allocation5 + $0x58] sm:$0xff]
    %v88 = vld [vmem:[#allocation5 + $0x60] sm:$0xff]
    %v89 = vld [vmem:[#allocation5 + $0x68] sm:$0xff]
    %v90 = vld [vmem:[#allocation5 + $0x70] sm:$0xff]
    %v91 = vld [vmem:[#allocation5 + $0x78] sm:$0xff]
    %v92 = vld [vmem:[#allocation5 + $0x80] sm:$0xff]
    %v93 = vld [vmem:[#allocation5 + $0x88] sm:$0xff]
    %v94 = vld [vmem:[#allocation5 + $0x90] sm:$0xff]
    %v95 = vld [vmem:[#allocation5 + $0x98] sm:$0xff]
    %v96 = vld [vmem:[#allocation5 + $0xa0] sm:$0xff]
    %v97 = vld [vmem:[#allocation5 + $0xa8] sm:$0xff]
    %v98 = vld [vmem:[#allocation5 + $0xb0] sm:$0xff]
    %v99 = vld [vmem:[#allocation5 + $0xb8] sm:$0xff]
    %v100 = vld [vmem:[#allocation5 + $0xc0] sm:$0xff]
    %v101 = vld [vmem:[#allocation5 + $0xc8] sm:$0xff]
    %v102 = vld [vmem:[#allocation5 + $0xd0] sm:$0xff]
    %v103 = vld [vmem:[#allocation5 + $0xd8] sm:$0xff]
    %v104 = vld [vmem:[#allocation5 + $0xe0] sm:$0xff]
    %v105 = vld [vmem:[#allocation5 + $0xe8] sm:$0xff]
    %v106 = vld [vmem:[#allocation5 + $0xf0] sm:$0xff]
    %v107 = vld [vmem:[#allocation5 + $0xf8] sm:$0xff]
    %v108 = vld [vmem:[#allocation5 + $0x100] sm:$0xff]
    %v109 = vld [vmem:[#allocation5 + $0x108] sm:$0xff]
    %v110 = vld [vmem:[#allocation5 + $0x110] sm:$0xff]
    %v111 = vld [vmem:[#allocation5 + $0x118] sm:$0xff]
    %v112 = vld [vmem:[#allocation5 + $0x120] sm:$0xff]
    %v113 = vld [vmem:[#allocation5 + $0x128] sm:$0xff]
    %v114 = vld [vmem:[#allocation5 + $0x130] sm:$0xff]
    %v115 = vld [vmem:[#allocation5 + $0x138] sm:$0xff]
    %v116 = vld [vmem:[#allocation5 + $0x140] sm:$0xff]
    %v117 = vld [vmem:[#allocation5 + $0x148] sm:$0xff]
    %v118 = vld [vmem:[#allocation5 + $0x150] sm:$0xff]
    %v119 = vld [vmem:[#allocation5 + $0x158] sm:$0xff]
    %v120 = vld [vmem:[#allocation5 + $0x160] sm:$0xff]
    %v121 = vld [vmem:[#allocation5 + $0x168] sm:$0xff]
    %v122 = vld [vmem:[#allocation5 + $0x170] sm:$0xff]
    %v123 = vld [vmem:[#allocation5 + $0x178] sm:$0xff]
    %v124 = vld [vmem:[#allocation5 + $0x180] sm:$0xff]
    %v125 = vld [vmem:[#allocation5 + $0x188] sm:$0xff]
    %v126 = vld [vmem:[#allocation5 + $0x190] sm:$0xff]
    %v127 = vld [vmem:[#allocation5 + $0x198] sm:$0xff]
    %v128 = vld [vmem:[#allocation5 + $0x1a0] sm:$0xff]
    %v129 = vld [vmem:[#allocation5 + $0x1a8] sm:$0xff]
    %v130 = vld [vmem:[#allocation5 + $0x1b0] sm:$0xff]
    %v131 = vld [vmem:[#allocation5 + $0x1b8] sm:$0xff]
    %v132 = vld [vmem:[#allocation5 + $0x1c0] sm:$0xff]
    %v133 = vld [vmem:[#allocation5 + $0x1c8] sm:$0xff]
    %v134 = vld [vmem:[#allocation5 + $0x1d0] sm:$0xff]
    %v135 = vld [vmem:[#allocation5 + $0x1d8] sm:$0xff]
    %v136 = vld [vmem:[#allocation5 + $0x1e0] sm:$0xff]
    %v137 = vld [vmem:[#allocation5 + $0x1e8] sm:$0xff]
    %v138 = vld [vmem:[#allocation5 + $0x1f0] sm:$0xff]
    %v139 = vld [vmem:[#allocation5 + $0x1f8] sm:$0xff]
    %v140 = vld [vmem:[#allocation5 + $0x200] sm:$0xff]
    %v141 = vld [vmem:[#allocation5 + $0x208] sm:$0xff]
    %v142 = vld [vmem:[#allocation5 + $0x210] sm:$0xff]
    %v143 = vld [vmem:[#allocation5 + $0x218] sm:$0xff]
    %v144 = vld [vmem:[#allocation5 + $0x220] sm:$0xff]
    %v145 = vld [vmem:[#allocation5 + $0x228] sm:$0xff]
    %v146 = vld [vmem:[#allocation5 + $0x230] sm:$0xff]
    %v147 = vld [vmem:[#allocation5 + $0x238] sm:$0xff]
    %v148 = vld [vmem:[#allocation5 + $0x240] sm:$0xff]
    %v149 = vld [vmem:[#allocation5 + $0x248] sm:$0xff]
    %v150 = vld [vmem:[#allocation5 + $0x250] sm:$0xff]
    %v151 = vld [vmem:[#allocation5 + $0x258] sm:$0xff]
    %v152 = vld [vmem:[#allocation5 + $0x260] sm:$0xff]
    %v153 = vld [vmem:[#allocation5 + $0x268] sm:$0xff]
    %v154 = vld [vmem:[#allocation5 + $0x270] sm:$0xff]
    %v155 = vld [vmem:[#allocation5 + $0x278] sm:$0xff]
    %v156 = vld [vmem:[#allocation5 + $0x280] sm:$0xff]
    %v157 = vld [vmem:[#allocation5 + $0x288] sm:$0xff]
    %v158 = vld [vmem:[#allocation5 + $0x290] sm:$0xff]
    %v159 = vld [vmem:[#allocation5 + $0x298] sm:$0xff]
    %v160 = vld [vmem:[#allocation5 + $0x2a0] sm:$0xff]
    %v161 = vld [vmem:[#allocation5 + $0x2a8] sm:$0xff]
    %v162 = vld [vmem:[#allocation5 + $0x2b0] sm:$0xff]
    %v163 = vld [vmem:[#allocation5 + $0x2b8] sm:$0xff]
    %v164 = vld [vmem:[#allocation5 + $0x2c0] sm:$0xff]
    %v165 = vld [vmem:[#allocation5 + $0x2c8] sm:$0xff]
    %v166 = vld [vmem:[#allocation5 + $0x2d0] sm:$0xff]
    %v167 = vld [vmem:[#allocation5 + $0x2d8] sm:$0xff]
    %v168 = vld [vmem:[#allocation5 + $0x2e0] sm:$0xff]
    %v169 = vld [vmem:[#allocation5 + $0x2e8] sm:$0xff]
    %v170 = vld [vmem:[#allocation5 + $0x2f0] sm:$0xff]
    %v171 = vld [vmem:[#allocation5 + $0x2f8] sm:$0xff]
    %v172 = vld [vmem:[%s2] sm:$0x3]
    %v174 = vlaneseq
    %v175 = vshrl.u32 %v174, 7
    %v176 = vsub.s32 0, %v175
    %v177 = vrot.slane %v172, %v176
    %v178 = vlaneseq
    %v179 = vshrl.u32 %v178, 7
    %v180 = vsub.s32 1, %v179
    %v181 = vrot.slane %v172, %v180
    %v190 = vunpack.c.l.b16 %v70
    %v191 = vunpack.c.h.b16 %v70
    %v192 = vunpack.c.l.b16 %v71
    %v193 = vunpack.c.h.b16 %v71
    %v194 = vunpack.c.l.b16 %v72
    %v195 = vunpack.c.h.b16 %v72
    %v196 = vunpack.c.l.b16 %v73
    %v197 = vunpack.c.h.b16 %v73
    %v198 = vunpack.c.l.b16 %v74
    %v199 = vunpack.c.h.b16 %v74
    %v200 = vunpack.c.l.b16 %v75
    %v201 = vunpack.c.h.b16 %v75
    %v202 = vpack.c.b16 %v196, %v190
    %v203 = vpack.c.b16 %v197, %v191
    %v204 = vpack.c.b16 %v198, %v192
    %v205 = vpack.c.b16 %v199, %v193
    %v206 = vpack.c.b16 %v200, %v194
    %v207 = vpack.c.b16 %v201, %v195
    %v310 = vunpack.c.l.b16 %v76
    %v311 = vunpack.c.h.b16 %v76
    %v312 = vunpack.c.l.b16 %v77
    %v313 = vunpack.c.h.b16 %v77
    %v314 = vunpack.c.l.b16 %v78
    %v315 = vunpack.c.h.b16 %v78
    %v316 = vunpack.c.l.b16 %v79
    %v317 = vunpack.c.h.b16 %v79
    %v318 = vunpack.c.l.b16 %v80
    %v319 = vunpack.c.h.b16 %v80
    %v320 = vunpack.c.l.b16 %v81
    %v321 = vunpack.c.h.b16 %v81
    %v322 = vunpack.c.l.b16 %v82
    %v323 = vunpack.c.h.b16 %v82
    %v324 = vunpack.c.l.b16 %v83
    %v325 = vunpack.c.h.b16 %v83
    %v326 = vunpack.c.l.b16 %v84
    %v327 = vunpack.c.h.b16 %v84
    %v328 = vunpack.c.l.b16 %v85
    %v329 = vunpack.c.h.b16 %v85
    %v330 = vunpack.c.l.b16 %v86
    %v331 = vunpack.c.h.b16 %v86
    %v332 = vunpack.c.l.b16 %v87
    %v333 = vunpack.c.h.b16 %v87
    %v334 = vunpack.c.l.b16 %v88
    %v335 = vunpack.c.h.b16 %v88
    %v336 = vunpack.c.l.b16 %v89
    %v337 = vunpack.c.h.b16 %v89
    %v338 = vunpack.c.l.b16 %v90
    %v339 = vunpack.c.h.b16 %v90
    %v340 = vunpack.c.l.b16 %v91
    %v341 = vunpack.c.h.b16 %v91
    %v342 = vunpack.c.l.b16 %v92
    %v343 = vunpack.c.h.b16 %v92
    %v344 = vunpack.c.l.b16 %v93
    %v345 = vunpack.c.h.b16 %v93
    %v346 = vunpack.c.l.b16 %v94
    %v347 = vunpack.c.h.b16 %v94
    %v348 = vunpack.c.l.b16 %v95
    %v349 = vunpack.c.h.b16 %v95
    %v350 = vunpack.c.l.b16 %v96
    %v351 = vunpack.c.h.b16 %v96
    %v352 = vunpack.c.l.b16 %v97
    %v353 = vunpack.c.h.b16 %v97
    %v354 = vunpack.c.l.b16 %v98
    %v355 = vunpack.c.h.b16 %v98
    %v356 = vunpack.c.l.b16 %v99
    %v357 = vunpack.c.h.b16 %v99
    %v358 = vunpack.c.l.b16 %v100
    %v359 = vunpack.c.h.b16 %v100
    %v360 = vunpack.c.l.b16 %v101
    %v361 = vunpack.c.h.b16 %v101
    %v362 = vunpack.c.l.b16 %v102
    %v363 = vunpack.c.h.b16 %v102
    %v364 = vunpack.c.l.b16 %v103
    %v365 = vunpack.c.h.b16 %v103
    %v366 = vunpack.c.l.b16 %v104
    %v367 = vunpack.c.h.b16 %v104
    %v368 = vunpack.c.l.b16 %v105
    %v369 = vunpack.c.h.b16 %v105
    %v370 = vunpack.c.l.b16 %v106
    %v371 = vunpack.c.h.b16 %v106
    %v372 = vunpack.c.l.b16 %v107
    %v373 = vunpack.c.h.b16 %v107
    %v374 = vunpack.c.l.b16 %v108
    %v375 = vunpack.c.h.b16 %v108
    %v376 = vunpack.c.l.b16 %v109
    %v377 = vunpack.c.h.b16 %v109
    %v378 = vunpack.c.l.b16 %v110
    %v379 = vunpack.c.h.b16 %v110
    %v380 = vunpack.c.l.b16 %v111
    %v381 = vunpack.c.h.b16 %v111
    %v382 = vunpack.c.l.b16 %v112
    %v383 = vunpack.c.h.b16 %v112
    %v384 = vunpack.c.l.b16 %v113
    %v385 = vunpack.c.h.b16 %v113
    %v386 = vunpack.c.l.b16 %v114
    %v387 = vunpack.c.h.b16 %v114
    %v388 = vunpack.c.l.b16 %v115
    %v389 = vunpack.c.h.b16 %v115
    %v390 = vunpack.c.l.b16 %v116
    %v391 = vunpack.c.h.b16 %v116
    %v392 = vunpack.c.l.b16 %v117
    %v393 = vunpack.c.h.b16 %v117
    %v394 = vunpack.c.l.b16 %v118
    %v395 = vunpack.c.h.b16 %v118
    %v396 = vunpack.c.l.b16 %v119
    %v397 = vunpack.c.h.b16 %v119
    %v398 = vunpack.c.l.b16 %v120
    %v399 = vunpack.c.h.b16 %v120
    %v400 = vunpack.c.l.b16 %v121
    %v401 = vunpack.c.h.b16 %v121
    %v402 = vunpack.c.l.b16 %v122
    %v403 = vunpack.c.h.b16 %v122
    %v404 = vunpack.c.l.b16 %v123
    %v405 = vunpack.c.h.b16 %v123
    %v406 = vunpack.c.l.b16 %v124
    %v407 = vunpack.c.h.b16 %v124
    %v408 = vunpack.c.l.b16 %v125
    %v409 = vunpack.c.h.b16 %v125
    %v410 = vunpack.c.l.b16 %v126
    %v411 = vunpack.c.h.b16 %v126
    %v412 = vunpack.c.l.b16 %v127
    %v413 = vunpack.c.h.b16 %v127
    %v414 = vunpack.c.l.b16 %v128
    %v415 = vunpack.c.h.b16 %v128
    %v416 = vunpack.c.l.b16 %v129
    %v417 = vunpack.c.h.b16 %v129
    %v418 = vunpack.c.l.b16 %v130
    %v419 = vunpack.c.h.b16 %v130
    %v420 = vunpack.c.l.b16 %v131
    %v421 = vunpack.c.h.b16 %v131
    %v422 = vunpack.c.l.b16 %v132
    %v423 = vunpack.c.h.b16 %v132
    %v424 = vunpack.c.l.b16 %v133
    %v425 = vunpack.c.h.b16 %v133
    %v426 = vunpack.c.l.b16 %v134
    %v427 = vunpack.c.h.b16 %v134
    %v428 = vunpack.c.l.b16 %v135
    %v429 = vunpack.c.h.b16 %v135
    %v430 = vunpack.c.l.b16 %v136
    %v431 = vunpack.c.h.b16 %v136
    %v432 = vunpack.c.l.b16 %v137
    %v433 = vunpack.c.h.b16 %v137
    %v434 = vunpack.c.l.b16 %v138
    %v435 = vunpack.c.h.b16 %v138
    %v436 = vunpack.c.l.b16 %v139
    %v437 = vunpack.c.h.b16 %v139
    %v438 = vunpack.c.l.b16 %v140
    %v439 = vunpack.c.h.b16 %v140
    %v440 = vunpack.c.l.b16 %v141
    %v441 = vunpack.c.h.b16 %v141
    %v442 = vunpack.c.l.b16 %v142
    %v443 = vunpack.c.h.b16 %v142
    %v444 = vunpack.c.l.b16 %v143
    %v445 = vunpack.c.h.b16 %v143
    %v446 = vunpack.c.l.b16 %v144
    %v447 = vunpack.c.h.b16 %v144
    %v448 = vunpack.c.l.b16 %v145
    %v449 = vunpack.c.h.b16 %v145
    %v450 = vunpack.c.l.b16 %v146
    %v451 = vunpack.c.h.b16 %v146
    %v452 = vunpack.c.l.b16 %v147
    %v453 = vunpack.c.h.b16 %v147
    %v454 = vunpack.c.l.b16 %v148
    %v455 = vunpack.c.h.b16 %v148
    %v456 = vunpack.c.l.b16 %v149
    %v457 = vunpack.c.h.b16 %v149
    %v458 = vunpack.c.l.b16 %v150
    %v459 = vunpack.c.h.b16 %v150
    %v460 = vunpack.c.l.b16 %v151
    %v461 = vunpack.c.h.b16 %v151
    %v462 = vunpack.c.l.b16 %v152
    %v463 = vunpack.c.h.b16 %v152
    %v464 = vunpack.c.l.b16 %v153
    %v465 = vunpack.c.h.b16 %v153
    %v466 = vunpack.c.l.b16 %v154
    %v467 = vunpack.c.h.b16 %v154
    %v468 = vunpack.c.l.b16 %v155
    %v469 = vunpack.c.h.b16 %v155
    %v470 = vunpack.c.l.b16 %v156
    %v471 = vunpack.c.h.b16 %v156
    %v472 = vunpack.c.l.b16 %v157
    %v473 = vunpack.c.h.b16 %v157
    %v474 = vunpack.c.l.b16 %v158
    %v475 = vunpack.c.h.b16 %v158
    %v476 = vunpack.c.l.b16 %v159
    %v477 = vunpack.c.h.b16 %v159
    %v478 = vunpack.c.l.b16 %v160
    %v479 = vunpack.c.h.b16 %v160
    %v480 = vunpack.c.l.b16 %v161
    %v481 = vunpack.c.h.b16 %v161
    %v482 = vunpack.c.l.b16 %v162
    %v483 = vunpack.c.h.b16 %v162
    %v484 = vunpack.c.l.b16 %v163
    %v485 = vunpack.c.h.b16 %v163
    %v486 = vunpack.c.l.b16 %v164
    %v487 = vunpack.c.h.b16 %v164
    %v488 = vunpack.c.l.b16 %v165
    %v489 = vunpack.c.h.b16 %v165
    %v490 = vunpack.c.l.b16 %v166
    %v491 = vunpack.c.h.b16 %v166
    %v492 = vunpack.c.l.b16 %v167
    %v493 = vunpack.c.h.b16 %v167
    %v494 = vunpack.c.l.b16 %v168
    %v495 = vunpack.c.h.b16 %v168
    %v496 = vunpack.c.l.b16 %v169
    %v497 = vunpack.c.h.b16 %v169
    %v498 = vunpack.c.l.b16 %v170
    %v499 = vunpack.c.h.b16 %v170
    %v500 = vunpack.c.l.b16 %v171
    %v501 = vunpack.c.h.b16 %v171
    %v502 = vpack.c.b16 %v312, %v310
    %v503 = vpack.c.b16 %v313, %v311
    %v504 = vpack.c.b16 %v316, %v314
    %v505 = vpack.c.b16 %v317, %v315
    %v506 = vpack.c.b16 %v320, %v318
    %v507 = vpack.c.b16 %v321, %v319
    %v508 = vpack.c.b16 %v324, %v322
    %v509 = vpack.c.b16 %v325, %v323
    %v510 = vpack.c.b16 %v328, %v326
    %v511 = vpack.c.b16 %v329, %v327
    %v512 = vpack.c.b16 %v332, %v330
    %v513 = vpack.c.b16 %v333, %v331
    %v514 = vpack.c.b16 %v336, %v334
    %v515 = vpack.c.b16 %v337, %v335
    %v516 = vpack.c.b16 %v340, %v338
    %v517 = vpack.c.b16 %v341, %v339
    %v518 = vpack.c.b16 %v344, %v342
    %v519 = vpack.c.b16 %v345, %v343
    %v520 = vpack.c.b16 %v348, %v346
    %v521 = vpack.c.b16 %v349, %v347
    %v522 = vpack.c.b16 %v352, %v350
    %v523 = vpack.c.b16 %v353, %v351
    %v524 = vpack.c.b16 %v356, %v354
    %v525 = vpack.c.b16 %v357, %v355
    %v526 = vpack.c.b16 %v360, %v358
    %v527 = vpack.c.b16 %v361, %v359
    %v528 = vpack.c.b16 %v364, %v362
    %v529 = vpack.c.b16 %v365, %v363
    %v530 = vpack.c.b16 %v368, %v366
    %v531 = vpack.c.b16 %v369, %v367
    %v532 = vpack.c.b16 %v372, %v370
    %v533 = vpack.c.b16 %v373, %v371
    %v534 = vpack.c.b16 %v376, %v374
    %v535 = vpack.c.b16 %v377, %v375
    %v536 = vpack.c.b16 %v380, %v378
    %v537 = vpack.c.b16 %v381, %v379
    %v538 = vpack.c.b16 %v384, %v382
    %v539 = vpack.c.b16 %v385, %v383
    %v540 = vpack.c.b16 %v388, %v386
    %v541 = vpack.c.b16 %v389, %v387
    %v542 = vpack.c.b16 %v392, %v390
    %v543 = vpack.c.b16 %v393, %v391
    %v544 = vpack.c.b16 %v396, %v394
    %v545 = vpack.c.b16 %v397, %v395
    %v546 = vpack.c.b16 %v400, %v398
    %v547 = vpack.c.b16 %v401, %v399
    %v548 = vpack.c.b16 %v404, %v402
    %v549 = vpack.c.b16 %v405, %v403
    %v550 = vpack.c.b16 %v408, %v406
    %v551 = vpack.c.b16 %v409, %v407
    %v552 = vpack.c.b16 %v412, %v410
    %v553 = vpack.c.b16 %v413, %v411
    %v554 = vpack.c.b16 %v416, %v414
    %v555 = vpack.c.b16 %v417, %v415
    %v556 = vpack.c.b16 %v420, %v418
    %v557 = vpack.c.b16 %v421, %v419
    %v558 = vpack.c.b16 %v424, %v422
    %v559 = vpack.c.b16 %v425, %v423
    %v560 = vpack.c.b16 %v428, %v426
    %v561 = vpack.c.b16 %v429, %v427
    %v562 = vpack.c.b16 %v432, %v430
    %v563 = vpack.c.b16 %v433, %v431
    %v564 = vpack.c.b16 %v436, %v434
    %v565 = vpack.c.b16 %v437, %v435
    %v566 = vpack.c.b16 %v440, %v438
    %v567 = vpack.c.b16 %v441, %v439
    %v568 = vpack.c.b16 %v444, %v442
    %v569 = vpack.c.b16 %v445, %v443
    %v570 = vpack.c.b16 %v448, %v446
    %v571 = vpack.c.b16 %v449, %v447
    %v572 = vpack.c.b16 %v452, %v450
    %v573 = vpack.c.b16 %v453, %v451
    %v574 = vpack.c.b16 %v456, %v454
    %v575 = vpack.c.b16 %v457, %v455
    %v576 = vpack.c.b16 %v460, %v458
    %v577 = vpack.c.b16 %v461, %v459
    %v578 = vpack.c.b16 %v464, %v462
    %v579 = vpack.c.b16 %v465, %v463
    %v580 = vpack.c.b16 %v468, %v466
    %v581 = vpack.c.b16 %v469, %v467
    %v582 = vpack.c.b16 %v472, %v470
    %v583 = vpack.c.b16 %v473, %v471
    %v584 = vpack.c.b16 %v476, %v474
    %v585 = vpack.c.b16 %v477, %v475
    %v586 = vpack.c.b16 %v480, %v478
    %v587 = vpack.c.b16 %v481, %v479
    %v588 = vpack.c.b16 %v484, %v482
    %v589 = vpack.c.b16 %v485, %v483
    %v590 = vpack.c.b16 %v488, %v486
    %v591 = vpack.c.b16 %v489, %v487
    %v592 = vpack.c.b16 %v492, %v490
    %v593 = vpack.c.b16 %v493, %v491
    %v594 = vpack.c.b16 %v496, %v494
    %v595 = vpack.c.b16 %v497, %v495
    %v596 = vpack.c.b16 %v500, %v498
    %v597 = vpack.c.b16 %v501, %v499
    %694 = vmatprep.subr.bf16.mxu0 %v517
    %695 = vmatpush1.bf16.msra.mxu0 %v516
    %696 = vmatprep.subr.bf16.mxu0 %v515
    %697 = vmatpush1.bf16.msra.mxu0 %v514
    %698 = vmatprep.subr.bf16.mxu0 %v513
    %699 = vmatpush1.bf16.msra.mxu0 %v512
    %700 = vmatprep.subr.bf16.mxu0 %v511
    %701 = vmatpush1.bf16.msra.mxu0 %v510
    %702 = vmatprep.subr.bf16.mxu0 %v509
    %703 = vmatpush1.bf16.msra.mxu0 %v508
    %704 = vmatprep.subr.bf16.mxu0 %v507
    %705 = vmatpush1.bf16.msra.mxu0 %v506
    %706 = vmatprep.subr.bf16.mxu0 %v505
    %707 = vmatpush1.bf16.msra.mxu0 %v504
    %708 = vmatprep.subr.bf16.mxu0 %v503
    %709 = vmatpush1.bf16.msra.mxu0 %v502
    %710 = vmatprep.subr.bf16.mxu0 %v533
    %711 = vmatpush2.bf16.msra.mxu0 %v532
    %712 = vmatprep.subr.bf16.mxu0 %v531
    %713 = vmatpush2.bf16.msra.mxu0 %v530
    %714 = vmatprep.subr.bf16.mxu0 %v529
    %715 = vmatpush2.bf16.msra.mxu0 %v528
    %716 = vmatprep.subr.bf16.mxu0 %v527
    %717 = vmatpush2.bf16.msra.mxu0 %v526
    %718 = vmatprep.subr.bf16.mxu0 %v525
    %719 = vmatpush2.bf16.msra.mxu0 %v524
    %720 = vmatprep.subr.bf16.mxu0 %v523
    %721 = vmatpush2.bf16.msra.mxu0 %v522
    %722 = vmatprep.subr.bf16.mxu0 %v521
    %723 = vmatpush2.bf16.msra.mxu0 %v520
    %724 = vmatprep.subr.bf16.mxu0 %v519
    %725 = vmatpush2.bf16.msra.mxu0 %v518
    %726 = vmatprep.mubr.bf16.mxu0 %v203
    %727 = vmatmul.mubr.bf16.gmra.mxu0 %v202
    %v728 = vpop.f32.mrf.mxu0
    %v729 = vadd.f32 %v177, %v728
    %v730 = vpop.f32.mrf.mxu0
    %v731 = vadd.f32 %v181, %v730
    %v732 = vpop.f32.mrf.mxu0
    %v733 = vadd.f32 %v177, %v732
    %v734 = vpop.f32.mrf.mxu0
    %v735 = vadd.f32 %v181, %v734
    %736 = vdwg.mxu0
    %737 = vmatprep.subr.bf16.mxu0 %v549
    %738 = vmatpush1.bf16.msra.mxu0 %v548
    %739 = vmatprep.subr.bf16.mxu0 %v547
    %740 = vmatpush1.bf16.msra.mxu0 %v546
    %741 = vmatprep.subr.bf16.mxu0 %v545
    %742 = vmatpush1.bf16.msra.mxu0 %v544
    %743 = vmatprep.subr.bf16.mxu0 %v543
    %744 = vmatpush1.bf16.msra.mxu0 %v542
    %745 = vmatprep.subr.bf16.mxu0 %v541
    %746 = vmatpush1.bf16.msra.mxu0 %v540
    %747 = vmatprep.subr.bf16.mxu0 %v539
    %748 = vmatpush1.bf16.msra.mxu0 %v538
    %749 = vmatprep.subr.bf16.mxu0 %v537
    %750 = vmatpush1.bf16.msra.mxu0 %v536
    %751 = vmatprep.subr.bf16.mxu0 %v535
    %752 = vmatpush1.bf16.msra.mxu0 %v534
    %753 = vmatprep.subr.bf16.mxu0 %v565
    %754 = vmatpush2.bf16.msra.mxu0 %v564
    %755 = vmatprep.subr.bf16.mxu0 %v563
    %756 = vmatpush2.bf16.msra.mxu0 %v562
    %757 = vmatprep.subr.bf16.mxu0 %v561
    %758 = vmatpush2.bf16.msra.mxu0 %v560
    %759 = vmatprep.subr.bf16.mxu0 %v559
    %760 = vmatpush2.bf16.msra.mxu0 %v558
    %761 = vmatprep.subr.bf16.mxu0 %v557
    %762 = vmatpush2.bf16.msra.mxu0 %v556
    %763 = vmatprep.subr.bf16.mxu0 %v555
    %764 = vmatpush2.bf16.msra.mxu0 %v554
    %765 = vmatprep.subr.bf16.mxu0 %v553
    %766 = vmatpush2.bf16.msra.mxu0 %v552
    %767 = vmatprep.subr.bf16.mxu0 %v551
    %768 = vmatpush2.bf16.msra.mxu0 %v550
    %769 = vmatprep.mubr.bf16.mxu0 %v205
    %770 = vmatmul.mubr.bf16.gmra.mxu0 %v204
    %v771 = vpop.f32.mrf.mxu0
    %v772 = vadd.f32 %v729, %v771
    %v773 = vpop.f32.mrf.mxu0
    %v774 = vadd.f32 %v731, %v773
    %v775 = vpop.f32.mrf.mxu0
    %v776 = vadd.f32 %v733, %v775
    %v777 = vpop.f32.mrf.mxu0
    %v778 = vadd.f32 %v735, %v777
    %779 = vdwg.mxu0
    %780 = vmatprep.subr.bf16.mxu0 %v581
    %781 = vmatpush1.bf16.msra.mxu0 %v580
    %782 = vmatprep.subr.bf16.mxu0 %v579
    %783 = vmatpush1.bf16.msra.mxu0 %v578
    %784 = vmatprep.subr.bf16.mxu0 %v577
    %785 = vmatpush1.bf16.msra.mxu0 %v576
    %786 = vmatprep.subr.bf16.mxu0 %v575
    %787 = vmatpush1.bf16.msra.mxu0 %v574
    %788 = vmatprep.subr.bf16.mxu0 %v573
    %789 = vmatpush1.bf16.msra.mxu0 %v572
    %790 = vmatprep.subr.bf16.mxu0 %v571
    %791 = vmatpush1.bf16.msra.mxu0 %v570
    %792 = vmatprep.subr.bf16.mxu0 %v569
    %793 = vmatpush1.bf16.msra.mxu0 %v568
    %794 = vmatprep.subr.bf16.mxu0 %v567
    %795 = vmatpush1.bf16.msra.mxu0 %v566
    %796 = vmatprep.subr.bf16.mxu0 %v597
    %797 = vmatpush2.bf16.msra.mxu0 %v596
    %798 = vmatprep.subr.bf16.mxu0 %v595
    %799 = vmatpush2.bf16.msra.mxu0 %v594
    %800 = vmatprep.subr.bf16.mxu0 %v593
    %801 = vmatpush2.bf16.msra.mxu0 %v592
    %802 = vmatprep.subr.bf16.mxu0 %v591
    %803 = vmatpush2.bf16.msra.mxu0 %v590
    %804 = vmatprep.subr.bf16.mxu0 %v589
    %805 = vmatpush2.bf16.msra.mxu0 %v588
    %806 = vmatprep.subr.bf16.mxu0 %v587
    %807 = vmatpush2.bf16.msra.mxu0 %v586
    %808 = vmatprep.subr.bf16.mxu0 %v585
    %809 = vmatpush2.bf16.msra.mxu0 %v584
    %810 = vmatprep.subr.bf16.mxu0 %v583
    %811 = vmatpush2.bf16.msra.mxu0 %v582
    %812 = vmatprep.mubr.bf16.mxu0 %v207
    %813 = vmatmul.mubr.bf16.gmra.mxu0 %v206
    %v814 = vpop.f32.mrf.mxu0
    %v815 = vadd.f32 %v772, %v814
    %v816 = vpop.f32.mrf.mxu0
    %v817 = vadd.f32 %v774, %v816
    %v818 = vpop.f32.mrf.mxu0
    %v819 = vadd.f32 %v776, %v818
    %v820 = vpop.f32.mrf.mxu0
    %v821 = vadd.f32 %v778, %v820
    %822 = vdwg.mxu0
    %v823 = vmax.f32 %v815, 0.0
    %v824 = vmax.f32 %v817, 0.0
    %v825 = vmax.f32 %v819, 0.0
    %v826 = vmax.f32 %v821, 0.0
    %v827 = vpack.c.bf16 %v825, %v823
    %v828 = vpack.c.bf16 %v826, %v824
    %v829 = vld [vmem:[#allocation7] sm:$0xf]
    %v830 = vld [vmem:[#allocation7 + $0x4] sm:$0xf]
    %v831 = vld [vmem:[#allocation7 + $0x8] sm:$0xf]
    %v832 = vld [vmem:[#allocation7 + $0xc] sm:$0xf]
    %v833 = vld [vmem:[#allocation7 + $0x10] sm:$0xf]
    %v834 = vld [vmem:[#allocation7 + $0x14] sm:$0xf]
    %v835 = vld [vmem:[#allocation7 + $0x18] sm:$0xf]
    %v836 = vld [vmem:[#allocation7 + $0x1c] sm:$0xf]
    %v837 = vld [vmem:[#allocation7 + $0x20] sm:$0xf]
    %v838 = vld [vmem:[#allocation7 + $0x24] sm:$0xf]
    %v839 = vld [vmem:[#allocation7 + $0x28] sm:$0xf]
    %v840 = vld [vmem:[#allocation7 + $0x2c] sm:$0xf]
    %v841 = vld [vmem:[#allocation7 + $0x30] sm:$0xf]
    %v842 = vld [vmem:[#allocation7 + $0x34] sm:$0xf]
    %v843 = vld [vmem:[#allocation7 + $0x38] sm:$0xf]
    %v844 = vld [vmem:[#allocation7 + $0x3c] sm:$0xf]
    %v845 = vld [vmem:[#allocation7 + $0x40] sm:$0xf]
    %v846 = vld [vmem:[#allocation7 + $0x44] sm:$0xf]
    %v847 = vld [vmem:[#allocation7 + $0x48] sm:$0xf]
    %v848 = vld [vmem:[#allocation7 + $0x4c] sm:$0xf]
    %v849 = vld [vmem:[#allocation7 + $0x50] sm:$0xf]
    %v850 = vld [vmem:[#allocation7 + $0x54] sm:$0xf]
    %v851 = vld [vmem:[#allocation7 + $0x58] sm:$0xf]
    %v852 = vld [vmem:[#allocation7 + $0x5c] sm:$0xf]
    %v853 = vld [vmem:[#allocation7 + $0x60] sm:$0xf]
    %v854 = vld [vmem:[#allocation7 + $0x64] sm:$0xf]
    %v855 = vld [vmem:[#allocation7 + $0x68] sm:$0xf]
    %v856 = vld [vmem:[#allocation7 + $0x6c] sm:$0xf]
    %v857 = vld [vmem:[#allocation7 + $0x70] sm:$0xf]
    %v858 = vld [vmem:[#allocation7 + $0x74] sm:$0xf]
    %v859 = vld [vmem:[#allocation7 + $0x78] sm:$0xf]
    %v860 = vld [vmem:[#allocation7 + $0x7c] sm:$0xf]
    %v861 = vld [vmem:[%s4] sm:$0x1]
    %v863 = vlaneseq
    %v864 = vshrl.u32 %v863, 7
    %v865 = vsub.s32 0, %v864
    %v866 = vrot.slane %v861, %v865
    %v900 = vunpack.c.l.b16 %v829
    %v901 = vunpack.c.l.b16 %v830
    %v902 = vunpack.c.l.b16 %v831
    %v903 = vunpack.c.l.b16 %v832
    %v904 = vunpack.c.l.b16 %v833
    %v905 = vunpack.c.l.b16 %v834
    %v906 = vunpack.c.l.b16 %v835
    %v907 = vunpack.c.l.b16 %v836
    %v908 = vunpack.c.l.b16 %v837
    %v909 = vunpack.c.l.b16 %v838
    %v910 = vunpack.c.l.b16 %v839
    %v911 = vunpack.c.l.b16 %v840
    %v912 = vunpack.c.l.b16 %v841
    %v913 = vunpack.c.l.b16 %v842
    %v914 = vunpack.c.l.b16 %v843
    %v915 = vunpack.c.l.b16 %v844
    %v916 = vunpack.c.l.b16 %v845
    %v917 = vunpack.c.l.b16 %v846
    %v918 = vunpack.c.l.b16 %v847
    %v919 = vunpack.c.l.b16 %v848
    %v920 = vunpack.c.l.b16 %v849
    %v921 = vunpack.c.l.b16 %v850
    %v922 = vunpack.c.l.b16 %v851
    %v923 = vunpack.c.l.b16 %v852
    %v924 = vunpack.c.l.b16 %v853
    %v925 = vunpack.c.l.b16 %v854
    %v926 = vunpack.c.l.b16 %v855
    %v927 = vunpack.c.l.b16 %v856
    %v928 = vunpack.c.l.b16 %v857
    %v929 = vunpack.c.l.b16 %v858
    %v930 = vunpack.c.l.b16 %v859
    %v931 = vunpack.c.l.b16 %v860
    %v932 = vpack.c.b16 %v901, %v900
    %v933 = vpack.c.b16 %v903, %v902
    %v934 = vpack.c.b16 %v905, %v904
    %v935 = vpack.c.b16 %v907, %v906
    %v936 = vpack.c.b16 %v909, %v908
    %v937 = vpack.c.b16 %v911, %v910
    %v938 = vpack.c.b16 %v913, %v912
    %v939 = vpack.c.b16 %v915, %v914
    %v940 = vpack.c.b16 %v917, %v916
    %v941 = vpack.c.b16 %v919, %v918
    %v942 = vpack.c.b16 %v921, %v920
    %v943 = vpack.c.b16 %v923, %v922
    %v944 = vpack.c.b16 %v925, %v924
    %v945 = vpack.c.b16 %v927, %v926
    %v946 = vpack.c.b16 %v929, %v928
    %v947 = vpack.c.b16 %v931, %v930
    %964 = vmatprep.subr.bf16.mxu0 0
    %965 = vmatpush1.bf16.msra.mxu0 %v939
    %966 = vmatprep.subr.bf16.mxu0 0
    %967 = vmatpush1.bf16.msra.mxu0 %v938
    %968 = vmatprep.subr.bf16.mxu0 0
    %969 = vmatpush1.bf16.msra.mxu0 %v937
    %970 = vmatprep.subr.bf16.mxu0 0
    %971 = vmatpush1.bf16.msra.mxu0 %v936
    %972 = vmatprep.subr.bf16.mxu0 0
    %973 = vmatpush1.bf16.msra.mxu0 %v935
    %974 = vmatprep.subr.bf16.mxu0 0
    %975 = vmatpush1.bf16.msra.mxu0 %v934
    %976 = vmatprep.subr.bf16.mxu0 0
    %977 = vmatpush1.bf16.msra.mxu0 %v933
    %978 = vmatprep.subr.bf16.mxu0 0
    %979 = vmatpush1.bf16.msra.mxu0 %v932
    %980 = vmatprep.subr.bf16.mxu0 0
    %981 = vmatpush2.bf16.msra.mxu0 %v947
    %982 = vmatprep.subr.bf16.mxu0 0
    %983 = vmatpush2.bf16.msra.mxu0 %v946
    %984 = vmatprep.subr.bf16.mxu0 0
    %985 = vmatpush2.bf16.msra.mxu0 %v945
    %986 = vmatprep.subr.bf16.mxu0 0
    %987 = vmatpush2.bf16.msra.mxu0 %v944
    %988 = vmatprep.subr.bf16.mxu0 0
    %989 = vmatpush2.bf16.msra.mxu0 %v943
    %990 = vmatprep.subr.bf16.mxu0 0
    %991 = vmatpush2.bf16.msra.mxu0 %v942
    %992 = vmatprep.subr.bf16.mxu0 0
    %993 = vmatpush2.bf16.msra.mxu0 %v941
    %994 = vmatprep.subr.bf16.mxu0 0
    %995 = vmatpush2.bf16.msra.mxu0 %v940
    %996 = vmatprep.mubr.bf16.mxu0 %v828
    %997 = vmatmul.mubr.bf16.gmra.mxu0 %v827
    %v998 = vpop.f32.mrf.mxu0
    %v999 = vadd.f32 %v866, %v998
    %v1000 = vpop.f32.mrf.mxu0
    %v1001 = vpop.f32.mrf.mxu0
    %v1002 = vadd.f32 %v866, %v1001
    %v1003 = vpop.f32.mrf.mxu0
    %1004 = vdwg.mxu0
    %v1005 = vmax.f32 %v999, 0.0
    %v1006 = vmax.f32 %v1002, 0.0
    %v1007 = vld [vmem:[%s5] sm:$0x1]
    %v1009 = vlaneseq
    %v1010 = vshrl.u32 %v1009, 7
    %v1011 = vsub.s32 0, %v1010
    %v1012 = vrot.slane %v1007, %v1011
    %v1014 = vmul.f32 %v1005, %v1012
    %v1015 = vmul.f32 %v1006, %v1012
    %1016 = vadd.xlane.f32.xlu0 %v1014
    %v1017 = vpop.xlane.xlu0 %1016
    %1018 = vadd.xlane.f32.xlu0 %v1015
    %v1019 = vpop.xlane.xlu0 %1018
    %v1020 = vld [vmem:[#allocation2] sm:$0x1]
    %v1022 = vlaneseq
    %v1023 = vshrl.u32 %v1022, 7
    %v1024 = vsub.s32 0, %v1023
    %v1025 = vrot.slane %v1020, %v1024
    %v1027 = vadd.f32 %v1017, %v1025
    %v1028 = vadd.f32 %v1019, %v1025
    %v1029 = vtanh.pop %v1027
    %v1030 = vtanh.pop %v1028
    %vm1031 = vcmask 7168
    %1032 = vst.msk [vmem:[%s7] sm:$0xff] %vm1031, %v1029
    %1033 = vst.msk [vmem:[%s7 + $0x8] sm:$0xff] %vm1031, %v1030
    // Predicated region
    $region42: #{tpu_custom_call.1} parent=1 // pred_check
      _
    $region43: #{tpu_custom_call.1} parent=1 // pred_check_branch
      %1035 = sbr.rel (0) target = $region45
    $region44: #{tpu_custom_call.1} parent=1 // pred_region
      _
    $region45: #{tpu_custom_call.1} parent=1 // pred_fallthru
      _
    // Predicated region
    $region46: #{tpu_custom_call.1} parent=1 // pred_check
      _
    $region47: #{tpu_custom_call.1} parent=1 // pred_check_branch
      %1037 = sbr.rel (0) target = $region49
    $region48: #{tpu_custom_call.1} parent=1 // pred_region
      _
    $region49: #{tpu_custom_call.1} parent=1 // pred_fallthru
      _
    %1038 = vsyncpa [#allocation4], 1
    %1039 = vsyncpa [#allocation6], 1

</llo_original>
